<compile_context>
chip_gen: v6e
topology: v6e:2x2x1
jax: 0.10.0
libtpu: 0.0.40
codegen_flags: <defaults>
</compile_context>

<pallas_src>
import jax
import jax.numpy as jnp
from jax.experimental import pallas as pl
from jax.experimental.pallas import tpu as pltpu

LATENT = 3
ENC_HIDDEN = [48, 48, 24, 12]
DEC_HIDDEN = [12, 24]
IN_FEATURES = 48
HEAD_ROWS = 2 * LATENT + DEC_HIDDEN[0]          # [log_var | mu | mu@dw0+db0] = 18


# ---------------------------------------------------------------------------
# Packed-parameter layout: one (272, 48) bf16 slab.  Weights are stored
# TRANSPOSED, i.e. (out_features, in_features), so the kernel computes
# Wt @ H with H = (in_features, TB) and the batch on the lane axis.
# Every block starts on a 16-row boundary (bf16 sublane packing).
# ---------------------------------------------------------------------------
def _rup16(n):
    return -(-n // 16) * 16


_PACK_W = 48                                      # widest in_features
_WEIGHT_BLOCKS = (
    # name     rows (out)                 cols (in)
    ("w01_t",  ENC_HIDDEN[1],             IN_FEATURES),     # fused Lin∘Lin (48,48)
    ("w2_t",   ENC_HIDDEN[2],             ENC_HIDDEN[1]),   # (24,48)
    ("w3_t",   ENC_HIDDEN[3],             ENC_HIDDEN[2]),   # (12,24)
    ("wh_t",   HEAD_ROWS,                 ENC_HIDDEN[3]),   # fused head (18,12)
    ("dw1_t",  DEC_HIDDEN[1],             DEC_HIDDEN[0]),   # (24,12)
    ("dw2_t",  IN_FEATURES,               DEC_HIDDEN[1]),   # (48,24)
    ("dw0_t",  DEC_HIDDEN[0],             LATENT),          # (12,3) -> VPU FMAs only
    ("bias",   48,                        8),               # column-stacked biases
)
_OFFSETS = {}
_row = 0
for _n, _r, _c in _WEIGHT_BLOCKS:
    _OFFSETS[_n] = (_row, _r, _c)
    _row += _rup16(_r)
_PACK_ROWS = _row                                  # 272

# bias name -> (column inside the "bias" block, length); stored as columns so
# they broadcast along the lane (batch) axis in-kernel.
_BIAS_COLS = {
    "b01": (0, ENC_HIDDEN[1]),
    "b2":  (1, ENC_HIDDEN[2]),
    "b3":  (2, ENC_HIDDEN[3]),
    "bh":  (3, HEAD_ROWS),
    "db1": (4, DEC_HIDDEN[1]),
    "db2": (5, IN_FEATURES),
}


# ---------------------------------------------------------------------------
# Kernel: one batch tile (TB lane columns) per grid step.
# ---------------------------------------------------------------------------
def _vae_kernel(x_ref, noise_ref, p_ref, out_ref, kl_ref):
    f32 = jnp.float32
    cdt = jnp.bfloat16                             # MXU operand dtype

    def wslab(name):                               # static, 16-row-aligned view
        r0, r, c = _OFFSETS[name]
        return p_ref[r0:r0 + r, :c]

    br0 = _OFFSETS["bias"][0]

    def bcol(name):                                # (out, 1) f32 column bias
        col, length = _BIAS_COLS[name]
        return p_ref[br0:br0 + length, col:col + 1].astype(f32)

    def lin(wname, bname, h_c):
        # (out, in) @ (in, TB): MXU N-dim = TB (full lanes), f32 accumulate.
        return jnp.dot(wslab(wname), h_c, preferred_element_type=f32) + bcol(bname)

    def relu_c(z):                                 # ReLU in f32, cast for next MXU feed
        return jnp.maximum(z, 0.0).astype(cdt)

    x = x_ref[:IN_FEATURES, :].astype(cdt)         # slice x[:48] inside the kernel

    # --- encoder (first two Linears pre-fused into w01; no ReLU between) -----
    h = relu_c(lin("w01_t", "b01", x))             # (48, TB)
    h = relu_c(lin("w2_t",  "b2",  h))             # (24, TB)
    h = relu_c(lin("w3_t",  "b3",  h))             # (12, TB)

    # --- fused head: rows = [log_var(3) | mu(3) | mu@dw0 + db0 (12)] ---------
    head = lin("wh_t", "bh", h)                    # (18, TB) f32
    log_var = head[:LATENT, :]
    mu = head[LATENT:2 * LATENT, :]
    d0 = head[2 * LATENT:, :]                      # decoder-entry, mu part pre-folded

    std = jnp.exp(0.5 * log_var)                   # one EUP exp, reused below
    # kl partials, one per batch column -> lane-dense (1, TB) store;
    # exp(log_var) == std*std.
    kl_ref[...] = jnp.sum(-0.5 - log_var + mu * mu + std * std,
                          axis=0, keepdims=True)

    # --- decoder entry: (std*noise) @ dw0 as 3 VPU outer-product FMAs --------
    sn = std * noise_ref[...]                      # (3, TB) f32
    dw0_t = wslab("dw0_t").astype(f32)             # (12, 3)
    for j in range(LATENT):                        # unrolled at trace time
        d0 = d0 + dw0_t[:, j:j + 1] * sn[j:j + 1, :]
    d = relu_c(d0)                                 # (12, TB)

    # --- rest of the decoder --------------------------------------------------
    d = relu_c(lin("dw1_t", "db1", d))             # (24, TB)
    out_ref[...] = lin("dw2_t", "db2", d).astype(out_ref.dtype)   # (48, TB)


# ---------------------------------------------------------------------------
# Host wrappers.
# ---------------------------------------------------------------------------
def _plan_batch(batch, block_cols):
    """Lane-aligned batch tile (multiple of 128) and padded batch size."""
    tb = max(128, (block_cols // 128) * 128)
    b128 = -(-batch // 128) * 128
    tb = min(tb, b128)
    padded = -(-b128 // tb) * tb
    return tb, padded


def vae_forward_t(x_t, noise_t, packed_params, *, block_cols=4096):
    """Feature-major core.  x_t: (F>=48, B) f32, noise_t: (3, B) f32,
    packed_params: (272, 48) bf16 slab.  Returns (decoded^T (48, B) f32, kl)."""
    F, B = x_t.shape
    assert F >= IN_FEATURES
    tb, bp = _plan_batch(B, block_cols)
    if bp != B:
        # Padding is safe: every column is independent; padded kl columns are
        # sliced off before the reduction below.
        x_t = jnp.pad(x_t, ((0, 0), (0, bp - B)))
        noise_t = jnp.pad(noise_t, ((0, 0), (0, bp - B)))
    grid = (bp // tb,)

    out_t, kl_row = pl.pallas_call(
        _vae_kernel,
        out_shape=(jax.ShapeDtypeStruct((IN_FEATURES, bp), jnp.float32),
                   jax.ShapeDtypeStruct((1, bp), jnp.float32)),
        grid=grid,
        in_specs=[
            pl.BlockSpec((F, tb), lambda i: (0, i)),                  # x^T tile
            pl.BlockSpec((LATENT, tb), lambda i: (0, i)),             # noise^T tile
            # Constant block index: the ~26 KB bf16 slab stays resident and is
            # not re-fetched across grid steps.
            pl.BlockSpec((_PACK_ROWS, _PACK_W), lambda i: (0, 0)),
        ],
        out_specs=(
            pl.BlockSpec((IN_FEATURES, tb), lambda i: (0, i)),        # decoded^T
            pl.BlockSpec((1, tb), lambda i: (0, i)),                  # kl row
        ),
        compiler_params=pltpu.CompilerParams(
            dimension_semantics=("parallel",)),    # megacore / v7x 2-TC sharding
    )(x_t, noise_t, packed_params)

    kl = jnp.sum(kl_row[:, :B])
    return out_t[:, :B], kl


def vae_forward(x, noise, packed_params, *, block_cols=4096):
    """Batch-major convenience wrapper matching the torch interface:
    x (B, F>=48), noise (B, 3).  Returns (decoded (B, 48), kl scalar)."""
    out_t, kl = vae_forward_t(x.T, noise.T, packed_params, block_cols=block_cols)
    return out_t.T, kl


# ---------------------------------------------------------------------------
# Parameter handling (host side).
# ---------------------------------------------------------------------------
def init_params(key):
    """Raw per-Linear params (demo init: kaiming-normal weights, uniform bias).
    Weights stored (in_features, out_features); biases (1, out_features)."""
    def kaiming_w(k, fi, fo):
        return jax.random.normal(k, (fi, fo), jnp.float32) * (2.0 / fi) ** 0.5

    def default_b(k, fi, fo):
        bound = 1.0 / (fi ** 0.5)
        return jax.random.uniform(k, (1, fo), jnp.float32, -bound, bound)

    dims = [(IN_FEATURES, ENC_HIDDEN[0]), (ENC_HIDDEN[0], ENC_HIDDEN[1]),
            (ENC_HIDDEN[1], ENC_HIDDEN[2]), (ENC_HIDDEN[2], ENC_HIDDEN[3]),
            (ENC_HIDDEN[3], LATENT), (ENC_HIDDEN[3], LATENT),      # var, mean
            (LATENT, DEC_HIDDEN[0]), (DEC_HIDDEN[0], DEC_HIDDEN[1]),
            (DEC_HIDDEN[1], IN_FEATURES)]
    keys = jax.random.split(key, 2 * len(dims))
    params = []
    for i, (fi, fo) in enumerate(dims):
        params.append(kaiming_w(keys[2 * i], fi, fo))
        params.append(default_b(keys[2 * i + 1], fi, fo))
    return params                                   # 18 arrays


def fuse_params(params):
    """Algebraic fusions (all exact up to f32 rounding):
       w01 = ew0 @ ew1 (no ReLU between them in the module),
       head = [log_var | mu | mu@dw0 + db0]  (folds the decoder-entry Linear)."""
    (ew0, eb0, ew1, eb1, ew2, eb2, ew3, eb3,
     wv, bv, wm, bm, dw0, db0, dw1, db1, dw2, db2) = params
    hi = jax.lax.Precision.HIGHEST
    w01 = jnp.dot(ew0, ew1, precision=hi)
    b01 = jnp.dot(eb0, ew1, precision=hi) + eb1
    whd = jnp.dot(wm, dw0, precision=hi)            # (12, 12)
    bhd = jnp.dot(bm, dw0, precision=hi) + db0      # (1, 12)
    wh = jnp.concatenate([wv, wm, whd], axis=1)     # (12, 18)
    bh = jnp.concatenate([bv, bm, bhd], axis=1)     # (1, 18)
    return {"w01": w01, "b01": b01, "w2": ew2, "b2": eb2, "w3": ew3, "b3": eb3,
            "wh": wh, "bh": bh, "dw0": dw0, "dw1": dw1, "db1": db1,
            "dw2": dw2, "db2": db2}


def prepare_params(params):
    """Fuse, transpose to (out, in), and pack into the (272, 48) bf16 slab."""
    fused = fuse_params(params)
    packed = jnp.zeros((_PACK_ROWS, _PACK_W), jnp.float32)
    for name, (r0, r, c) in _OFFSETS.items():
        if name == "bias":
            continue
        packed = packed.at[r0:r0 + r, :c].set(
            fused[name[:-2]].T.astype(jnp.float32))
    br0 = _OFFSETS["bias"][0]
    for name, (col, length) in _BIAS_COLS.items():
        packed = packed.at[br0:br0 + length, col].set(
            fused[name].astype(jnp.float32).reshape(length))
    return packed.astype(jnp.bfloat16)


def unpack_params(packed):
    """Recover the fused, bf16-quantized tensors (batch-major) for testing."""
    p = jnp.asarray(packed, jnp.float32)
    fused = {}
    for name, (r0, r, c) in _OFFSETS.items():
        if name == "bias":
            continue
        fused[name[:-2]] = p[r0:r0 + r, :c].T
    br0 = _OFFSETS["bias"][0]
    for name, (col, length) in _BIAS_COLS.items():
        fused[name] = p[br0:br0 + length, col][None, :]
    return fused


# ---------------------------------------------------------------------------
# Pure-JAX references (for the self-check).
# ---------------------------------------------------------------------------
def _fused_forward(x, noise, fused, operand_dtype=None):
    """Exactly what the kernel computes, batch-major.  If operand_dtype is set,
    matmul operands are cast to it (mimics the kernel's bf16 MXU feeds)."""
    hi = jax.lax.Precision.HIGHEST

    def mm(a, w):
        if operand_dtype is not None:
            a, w = a.astype(operand_dtype), w.astype(operand_dtype)
        return jnp.dot(a, w, precision=hi, preferred_element_type=jnp.float32)

    h = x[:, :IN_FEATURES]
    h = jnp.maximum(mm(h, fused["w01"]) + fused["b01"], 0.0)
    h = jnp.maximum(mm(h, fused["w2"]) + fused["b2"], 0.0)
    h = jnp.maximum(mm(h, fused["w3"]) + fused["b3"], 0.0)
    head = mm(h, fused["wh"]) + fused["bh"]
    log_var = head[:, :LATENT]
    mu = head[:, LATENT:2 * LATENT]
    d0 = head[:, 2 * LATENT:]
    std = jnp.exp(0.5 * log_var)
    kl = jnp.sum(-0.5 - log_var + mu * mu + std * std)
    d0 = d0 + jnp.dot(std * noise, fused["dw0"], precision=hi)   # f32, like kernel
    d = jnp.maximum(d0, 0.0)
    d = jnp.maximum(mm(d, fused["dw1"]) + fused["db1"], 0.0)
    return mm(d, fused["dw2"]) + fused["db2"], kl


def _raw_forward(x, noise, params):
    """The torch module math, unfused, f32."""
    (ew0, eb0, ew1, eb1, ew2, eb2, ew3, eb3,
     wv, bv, wm, bm, dw0, db0, dw1, db1, dw2, db2) = params
    hi = jax.lax.Precision.HIGHEST
    mm = lambda a, b: jnp.dot(a, b, precision=hi)
    h = x[:, :IN_FEATURES]
    h = mm(h, ew0) + eb0
    h = jnp.maximum(mm(h, ew1) + eb1, 0.0)
    h = jnp.maximum(mm(h, ew2) + eb2, 0.0)
    h = jnp.maximum(mm(h, ew3) + eb3, 0.0)
    log_var = mm(h, wv) + bv
    mu = mm(h, wm) + bm
    encoded = mu + jnp.exp(0.5 * log_var) * noise
    kl = jnp.sum(-0.5 - log_var + mu * mu + jnp.exp(log_var))
    d = jnp.maximum(mm(encoded, dw0) + db0, 0.0)
    d = jnp.maximum(mm(d, dw1) + db1, 0.0)
    return mm(d, dw2) + db2, kl


# ---------------------------------------------------------------------------
# Demo / self-check.
# ---------------------------------------------------------------------------
if __name__ == "__main__":
    key = jax.random.PRNGKey(0)
    kx, kn, kp = jax.random.split(key, 3)

    B = 256        # small; two lane-aligned 128-column tiles -> grid=(2,) (feeds both v7x TCs)
    F = 50         # 48 features + 2 extras (conditioned-data layout); kernel uses x[:, :48]
    x = jax.random.normal(kx, (B, F), jnp.float32)
    # Deterministic stand-in for torch.distributions.Normal(0,1).sample(mu.shape)
    noise = jax.random.normal(kn, (B, LATENT), jnp.float32)

    raw_params = init_params(kp)
    packed = prepare_params(raw_params)

    out, kl = vae_forward(x, noise, packed, block_cols=128)   # grid=(2,)
    jax.block_until_ready((out, kl))

    assert out.shape == (B, IN_FEATURES) and out.dtype == jnp.float32
    assert bool(jnp.isfinite(out).all()) and bool(jnp.isfinite(kl))

    # Check A: host-side fusion algebra (f32) matches the raw torch-style math.
    fo, fkl = _fused_forward(x, noise, fuse_params(raw_params))
    ro, rkl = _raw_forward(x, noise, raw_params)
    assert bool(jnp.allclose(fo, ro, rtol=1e-3, atol=1e-3))
    assert bool(jnp.allclose(fkl, rkl, rtol=1e-3, atol=1e-3))

    # Check B: kernel matches a pure-JAX model of the exact packed/bf16 compute.
    qo, qkl = _fused_forward(x, noise, unpack_params(packed),
                             operand_dtype=jnp.bfloat16)
    assert bool(jnp.allclose(out, qo, rtol=2e-2, atol=2e-2))
    assert bool(jnp.allclose(kl, qkl, rtol=2e-2, atol=2e-2))

    print("KERNEL_OK")
</pallas_src>

<mosaic_0001>
module attributes {stable_mosaic.version = 11 : i64} {
  func.func @_vae_kernel(%arg0: i32, %arg1: memref<50x128xf32, #tpu.memory_space<vmem>>, %arg2: memref<3x128xf32, #tpu.memory_space<vmem>>, %arg3: memref<272x48xbf16, #tpu.memory_space<vmem>>, %arg4: memref<48x128xf32, #tpu.memory_space<vmem>>, %arg5: memref<1x128xf32, #tpu.memory_space<vmem>>) attributes {dimension_semantics = [#tpu.dimension_semantics<parallel>], iteration_bounds = array<i64: 2>, scalar_prefetch = 0 : i64, scratch_operands = 0 : i64, tpu.core_type = #tpu.core_type<tc>, window_params = [{transform_indices = @transform_0, window_bounds = array<i64: 50, 128>}, {transform_indices = @transform_1, window_bounds = array<i64: 3, 128>}, {pipeline_mode = #tpu.pipeline_mode<synchronous>, transform_indices = @transform_2, window_bounds = array<i64: 272, 48>}, {transform_indices = @transform_3, window_bounds = array<i64: 48, 128>}, {transform_indices = @transform_4, window_bounds = array<i64: 1, 128>}]} {
    %c0 = arith.constant 0 : index
    %c0_0 = arith.constant 0 : index
    %0 = vector.load %arg1[%c0, %c0_0] : memref<50x128xf32, #tpu.memory_space<vmem>>, vector<48x128xf32>
    %1 = arith.truncf %0 : vector<48x128xf32> to vector<48x128xbf16>
    %c0_1 = arith.constant 0 : index
    %c0_2 = arith.constant 0 : index
    %2 = vector.load %arg3[%c0_1, %c0_2] : memref<272x48xbf16, #tpu.memory_space<vmem>>, vector<48x48xbf16>
    %cst = arith.constant dense<0.000000e+00> : vector<48x128xf32>
    %3 = tpu.matmul %2, %1, %cst {dimension_numbers = #tpu.dot_dimension_numbers<[1], [0], [0], [1], [0, 0, 1, 1], [], []>} : vector<48x48xbf16>, vector<48x128xbf16>, vector<48x128xf32> -> vector<48x128xf32>
    %c224 = arith.constant 224 : index
    %c0_3 = arith.constant 0 : index
    %4 = vector.load %arg3[%c224, %c0_3] : memref<272x48xbf16, #tpu.memory_space<vmem>>, vector<48x1xbf16>
    %5 = arith.extf %4 : vector<48x1xbf16> to vector<48x1xf32>
    %6 = vector.broadcast %5 : vector<48x1xf32> to vector<48x128xf32>
    %7 = arith.addf %3, %6 : vector<48x128xf32>
    %cst_4 = arith.constant 0.000000e+00 : f32
    %8 = vector.broadcast %cst_4 : f32 to vector<48x128xf32>
    %9 = arith.maximumf %7, %8 : vector<48x128xf32>
    %10 = arith.truncf %9 : vector<48x128xf32> to vector<48x128xbf16>
    %c48 = arith.constant 48 : index
    %c0_5 = arith.constant 0 : index
    %11 = vector.load %arg3[%c48, %c0_5] : memref<272x48xbf16, #tpu.memory_space<vmem>>, vector<24x48xbf16>
    %cst_6 = arith.constant dense<0.000000e+00> : vector<24x128xf32>
    %12 = tpu.matmul %11, %10, %cst_6 {dimension_numbers = #tpu.dot_dimension_numbers<[1], [0], [0], [1], [0, 0, 1, 1], [], []>} : vector<24x48xbf16>, vector<48x128xbf16>, vector<24x128xf32> -> vector<24x128xf32>
    %c224_7 = arith.constant 224 : index
    %c1 = arith.constant 1 : index
    %13 = vector.load %arg3[%c224_7, %c1] : memref<272x48xbf16, #tpu.memory_space<vmem>>, vector<24x1xbf16>
    %14 = arith.extf %13 : vector<24x1xbf16> to vector<24x1xf32>
    %15 = vector.broadcast %14 : vector<24x1xf32> to vector<24x128xf32>
    %16 = arith.addf %12, %15 : vector<24x128xf32>
    %cst_8 = arith.constant 0.000000e+00 : f32
    %17 = vector.broadcast %cst_8 : f32 to vector<24x128xf32>
    %18 = arith.maximumf %16, %17 : vector<24x128xf32>
    %19 = arith.truncf %18 : vector<24x128xf32> to vector<24x128xbf16>
    %c80 = arith.constant 80 : index
    %c0_9 = arith.constant 0 : index
    %20 = vector.load %arg3[%c80, %c0_9] : memref<272x48xbf16, #tpu.memory_space<vmem>>, vector<12x24xbf16>
    %cst_10 = arith.constant dense<0.000000e+00> : vector<12x128xf32>
    %21 = tpu.matmul %20, %19, %cst_10 {dimension_numbers = #tpu.dot_dimension_numbers<[1], [0], [0], [1], [0, 0, 1, 1], [], []>} : vector<12x24xbf16>, vector<24x128xbf16>, vector<12x128xf32> -> vector<12x128xf32>
    %c224_11 = arith.constant 224 : index
    %c2 = arith.constant 2 : index
    %22 = vector.load %arg3[%c224_11, %c2] : memref<272x48xbf16, #tpu.memory_space<vmem>>, vector<12x1xbf16>
    %23 = arith.extf %22 : vector<12x1xbf16> to vector<12x1xf32>
    %24 = vector.broadcast %23 : vector<12x1xf32> to vector<12x128xf32>
    %25 = arith.addf %21, %24 : vector<12x128xf32>
    %cst_12 = arith.constant 0.000000e+00 : f32
    %26 = vector.broadcast %cst_12 : f32 to vector<12x128xf32>
    %27 = arith.maximumf %25, %26 : vector<12x128xf32>
    %28 = arith.truncf %27 : vector<12x128xf32> to vector<12x128xbf16>
    %c96 = arith.constant 96 : index
    %c0_13 = arith.constant 0 : index
    %29 = vector.load %arg3[%c96, %c0_13] : memref<272x48xbf16, #tpu.memory_space<vmem>>, vector<18x12xbf16>
    %cst_14 = arith.constant dense<0.000000e+00> : vector<18x128xf32>
    %30 = tpu.matmul %29, %28, %cst_14 {dimension_numbers = #tpu.dot_dimension_numbers<[1], [0], [0], [1], [0, 0, 1, 1], [], []>} : vector<18x12xbf16>, vector<12x128xbf16>, vector<18x128xf32> -> vector<18x128xf32>
    %c224_15 = arith.constant 224 : index
    %c3 = arith.constant 3 : index
    %31 = vector.load %arg3[%c224_15, %c3] : memref<272x48xbf16, #tpu.memory_space<vmem>>, vector<18x1xbf16>
    %32 = arith.extf %31 : vector<18x1xbf16> to vector<18x1xf32>
    %33 = vector.broadcast %32 : vector<18x1xf32> to vector<18x128xf32>
    %34 = arith.addf %30, %33 : vector<18x128xf32>
    %35 = vector.extract_strided_slice %34 {offsets = [0, 0], sizes = [3, 128], strides = [1, 1]} : vector<18x128xf32> to vector<3x128xf32>
    %36 = vector.extract_strided_slice %34 {offsets = [3, 0], sizes = [3, 128], strides = [1, 1]} : vector<18x128xf32> to vector<3x128xf32>
    %37 = vector.extract_strided_slice %34 {offsets = [6, 0], sizes = [12, 128], strides = [1, 1]} : vector<18x128xf32> to vector<12x128xf32>
    %cst_16 = arith.constant 5.000000e-01 : f32
    %38 = vector.broadcast %cst_16 : f32 to vector<3x128xf32>
    %39 = arith.mulf %38, %35 : vector<3x128xf32>
    %40 = math.exp %39 : vector<3x128xf32>
    %cst_17 = arith.constant -5.000000e-01 : f32
    %41 = vector.broadcast %cst_17 : f32 to vector<3x128xf32>
    %42 = arith.subf %41, %35 : vector<3x128xf32>
    %43 = arith.mulf %36, %36 : vector<3x128xf32>
    %44 = arith.addf %42, %43 : vector<3x128xf32>
    %45 = arith.mulf %40, %40 : vector<3x128xf32>
    %46 = arith.addf %44, %45 : vector<3x128xf32>
    %cst_18 = arith.constant dense<0.000000e+00> : vector<128xf32>
    %47 = vector.multi_reduction <add>, %46, %cst_18 [0] : vector<3x128xf32> to vector<128xf32>
    %48 = vector.shape_cast %47 : vector<128xf32> to vector<1x128xf32>
    %c0_19 = arith.constant 0 : index
    %c0_20 = arith.constant 0 : index
    %49 = vector.load %arg5[%c0_19, %c0_20] : memref<1x128xf32, #tpu.memory_space<vmem>>, vector<1x128xf32>
    tpu.vector_store %arg5[%c0_19, %c0_20], %48 {strides = array<i32>} : memref<1x128xf32, #tpu.memory_space<vmem>>, vector<1x128xf32>,
    %c0_21 = arith.constant 0 : index
    %c0_22 = arith.constant 0 : index
    %50 = vector.load %arg2[%c0_21, %c0_22] : memref<3x128xf32, #tpu.memory_space<vmem>>, vector<3x128xf32>
    %51 = arith.mulf %40, %50 : vector<3x128xf32>
    %c208 = arith.constant 208 : index
    %c0_23 = arith.constant 0 : index
    %52 = vector.load %arg3[%c208, %c0_23] : memref<272x48xbf16, #tpu.memory_space<vmem>>, vector<12x3xbf16>
    %53 = arith.extf %52 : vector<12x3xbf16> to vector<12x3xf32>
    %54 = vector.extract_strided_slice %53 {offsets = [0, 0], sizes = [12, 1], strides = [1, 1]} : vector<12x3xf32> to vector<12x1xf32>
    %55 = vector.extract_strided_slice %51 {offsets = [0, 0], sizes = [1, 128], strides = [1, 1]} : vector<3x128xf32> to vector<1x128xf32>
    %56 = vector.broadcast %54 : vector<12x1xf32> to vector<12x128xf32>
    %57 = vector.broadcast %55 : vector<1x128xf32> to vector<12x128xf32>
    %58 = arith.mulf %56, %57 : vector<12x128xf32>
    %59 = arith.addf %37, %58 : vector<12x128xf32>
    %60 = vector.extract_strided_slice %53 {offsets = [0, 1], sizes = [12, 1], strides = [1, 1]} : vector<12x3xf32> to vector<12x1xf32>
    %61 = vector.extract_strided_slice %51 {offsets = [1, 0], sizes = [1, 128], strides = [1, 1]} : vector<3x128xf32> to vector<1x128xf32>
    %62 = vector.broadcast %60 : vector<12x1xf32> to vector<12x128xf32>
    %63 = vector.broadcast %61 : vector<1x128xf32> to vector<12x128xf32>
    %64 = arith.mulf %62, %63 : vector<12x128xf32>
    %65 = arith.addf %59, %64 : vector<12x128xf32>
    %66 = vector.extract_strided_slice %53 {offsets = [0, 2], sizes = [12, 1], strides = [1, 1]} : vector<12x3xf32> to vector<12x1xf32>
    %67 = vector.extract_strided_slice %51 {offsets = [2, 0], sizes = [1, 128], strides = [1, 1]} : vector<3x128xf32> to vector<1x128xf32>
    %68 = vector.broadcast %66 : vector<12x1xf32> to vector<12x128xf32>
    %69 = vector.broadcast %67 : vector<1x128xf32> to vector<12x128xf32>
    %70 = arith.mulf %68, %69 : vector<12x128xf32>
    %71 = arith.addf %65, %70 : vector<12x128xf32>
    %cst_24 = arith.constant 0.000000e+00 : f32
    %72 = vector.broadcast %cst_24 : f32 to vector<12x128xf32>
    %73 = arith.maximumf %71, %72 : vector<12x128xf32>
    %74 = arith.truncf %73 : vector<12x128xf32> to vector<12x128xbf16>
    %c128 = arith.constant 128 : index
    %c0_25 = arith.constant 0 : index
    %75 = vector.load %arg3[%c128, %c0_25] : memref<272x48xbf16, #tpu.memory_space<vmem>>, vector<24x12xbf16>
    %cst_26 = arith.constant dense<0.000000e+00> : vector<24x128xf32>
    %76 = tpu.matmul %75, %74, %cst_26 {dimension_numbers = #tpu.dot_dimension_numbers<[1], [0], [0], [1], [0, 0, 1, 1], [], []>} : vector<24x12xbf16>, vector<12x128xbf16>, vector<24x128xf32> -> vector<24x128xf32>
    %c224_27 = arith.constant 224 : index
    %c4 = arith.constant 4 : index
    %77 = vector.load %arg3[%c224_27, %c4] : memref<272x48xbf16, #tpu.memory_space<vmem>>, vector<24x1xbf16>
    %78 = arith.extf %77 : vector<24x1xbf16> to vector<24x1xf32>
    %79 = vector.broadcast %78 : vector<24x1xf32> to vector<24x128xf32>
    %80 = arith.addf %76, %79 : vector<24x128xf32>
    %cst_28 = arith.constant 0.000000e+00 : f32
    %81 = vector.broadcast %cst_28 : f32 to vector<24x128xf32>
    %82 = arith.maximumf %80, %81 : vector<24x128xf32>
    %83 = arith.truncf %82 : vector<24x128xf32> to vector<24x128xbf16>
    %c160 = arith.constant 160 : index
    %c0_29 = arith.constant 0 : index
    %84 = vector.load %arg3[%c160, %c0_29] : memref<272x48xbf16, #tpu.memory_space<vmem>>, vector<48x24xbf16>
    %cst_30 = arith.constant dense<0.000000e+00> : vector<48x128xf32>
    %85 = tpu.matmul %84, %83, %cst_30 {dimension_numbers = #tpu.dot_dimension_numbers<[1], [0], [0], [1], [0, 0, 1, 1], [], []>} : vector<48x24xbf16>, vector<24x128xbf16>, vector<48x128xf32> -> vector<48x128xf32>
    %c224_31 = arith.constant 224 : index
    %c5 = arith.constant 5 : index
    %86 = vector.load %arg3[%c224_31, %c5] : memref<272x48xbf16, #tpu.memory_space<vmem>>, vector<48x1xbf16>
    %87 = arith.extf %86 : vector<48x1xbf16> to vector<48x1xf32>
    %88 = vector.broadcast %87 : vector<48x1xf32> to vector<48x128xf32>
    %89 = arith.addf %85, %88 : vector<48x128xf32>
    %c0_32 = arith.constant 0 : index
    %c0_33 = arith.constant 0 : index
    %90 = vector.load %arg4[%c0_32, %c0_33] : memref<48x128xf32, #tpu.memory_space<vmem>>, vector<48x128xf32>
    tpu.vector_store %arg4[%c0_32, %c0_33], %89 {strides = array<i32>} : memref<48x128xf32, #tpu.memory_space<vmem>>, vector<48x128xf32>,
    return
  }
  func.func @transform_0(%arg0: i32) -> (i32, i32) {
    %c0_i32 = arith.constant 0 : i32
    %c0_i32_0 = arith.constant 0 : i32
    return %c0_i32, %arg0 : i32, i32
  }
  func.func @transform_1(%arg0: i32) -> (i32, i32) {
    %c0_i32 = arith.constant 0 : i32
    %c0_i32_0 = arith.constant 0 : i32
    return %c0_i32, %arg0 : i32, i32
  }
  func.func @transform_2(%arg0: i32) -> (i32, i32) {
    %c0_i32 = arith.constant 0 : i32
    %c0_i32_0 = arith.constant 0 : i32
    %c0_i32_1 = arith.constant 0 : i32
    return %c0_i32, %c0_i32_0 : i32, i32
  }
  func.func @transform_3(%arg0: i32) -> (i32, i32) {
    %c0_i32 = arith.constant 0 : i32
    %c0_i32_0 = arith.constant 0 : i32
    return %c0_i32, %arg0 : i32, i32
  }
  func.func @transform_4(%arg0: i32) -> (i32, i32) {
    %c0_i32 = arith.constant 0 : i32
    %c0_i32_0 = arith.constant 0 : i32
    return %c0_i32, %arg0 : i32, i32
  }
}

</mosaic_0001>

<llo_original>
// kernel: tpu_custom_call.1
$region0: #{tpu_custom_call.1}
  #allocation0 [shape = 'u32[]', space=smem, size = 0x4, offset = 0x4, fixed_abs, tag = 'smem constant byte address 0x4 - core index']
  #allocation1 [shape = 'u32[144,128]{1,0:T(1,128)}', space=vmem, size = 0x12000, scoped, tag = 'internal scratch']
  %s0 = inlined_call_operand.vmem [shape: f32[50,256], index: 0, kind: input, shape index: {}]
  %s1 = inlined_call_operand.vmem [shape: f32[3,256], index: 1, kind: input, shape index: {}]
  %s2 = inlined_call_operand.vmem [shape: bf16[272,48], index: 2, kind: input, shape index: {}]
  %s3 = inlined_call_operand.hbm [shape: f32[48,256], index: 3, kind: output, shape index: {0}]
  %s4 = inlined_call_operand.hbm [shape: f32[1,256], index: 4, kind: output, shape index: {1}]
  %5 = xla_tuple %s3, %s4
  %s6 = sld [smem:[#allocation0]]
  $region91: #{tpu_custom_call.1} parent=0
    _
  %s8 = ssub.s32 1, %s6
  %s9 = scalar_select 0, %s8, %s6
  $region1: #{tpu_custom_call.1} parent=0
    #allocation2 [shape = 'u8[57344]{0}', space=vmem, size = 0xe000, scoped, tag = 'input window, operand 0']
    #allocation3 [shape = 'u8[49152]{0}', space=vmem, size = 0xc000, scoped, tag = 'output window, operand 0']
    #allocation4 [shape = 's32[2]{0}', space=sflag, size = 0x8, scoped, tag = 'scoped memory for tpu_custom_call.1']
    #allocation5 [shape = 'u8[1024]{0}', space=vmem, size = 0x400, scoped, tag = 'output window, operand 1']
    #allocation6 [shape = 's32[2]{0}', space=sflag, size = 0x8, scoped, tag = 'scoped memory for tpu_custom_call.1']
    %10 = vsyncpa [#allocation4], 0
    %s11 = scalar_lea.sflag [#allocation4], 1
    %12 = vsyncpa %s11, 0
    %13 = vsyncpa [#allocation6], 0
    %s14 = scalar_lea.sflag [#allocation6], 1
    %15 = vsyncpa %s14, 0
    loop: start=0, step=1, limit=4
    $region2: #{tpu_custom_call.1} parent=1 // loop_pre_header
      _
    $region3: #{tpu_custom_call.1} parent=1 // loop_header
      %s17 = sphi 0, %s21
      %p18 = scmp.ge.s32.totalorder %s17, 4
      %s27 = sphi 0, %s29
      %s30 = sphi 0, %s27
      %s31 = sphi 0, %s30
      %s47 = sphi 0, %s31
      %s53 = sphi 0, %s55
      %s56 = sphi 0, %s53
      %s57 = sphi 0, %s56
      %s73 = sphi 0, %s57
      %s77 = sphi 0, %s77
      %s79 = sphi 0, %s77
      %s80 = sphi 0, %s79
      %s94 = sphi 0, %s80
      %s100 = sphi 0, %s102
      %s103 = sphi 0, %s100
      %s104 = sphi 0, %s103
      %s120 = sphi 0, %s104
      %s126 = sphi 0, %s128
      %s129 = sphi 0, %s126
      %s130 = sphi 0, %s129
      %s146 = sphi 0, %s130
    $region4: #{tpu_custom_call.1} parent=1 // loop_header_branch
      %20 = sbr.rel (%p18) target = $region8
    $region5: #{tpu_custom_call.1} parent=1 // loop_body
      %s22 = ssub.s32 %s17, 1
      %s23 = ssub.s32 %s17, 2
      %s24 = sadd.s32 %s17, 1
      %s25 = ssub.s32 %s17, %s24
      %p26 = scmp.eq.s32.totalorder %s25, 0
      %s28 = sadd.s32 %s27, 1
      %s29 = scalar_select %p26, %s27, %s28
      %p32 = pneg %p26
      %p33 = scmp.eq.s32.totalorder %s17, 1
      %p34 = por %p32, %p33
      %p35 = scmp.ne.s32.totalorder %s27, %s30
      %p36 = scmp.eq.s32.totalorder %s17, 0
      %p37 = por %p35, %p36
      %p38 = scmp.ne.s32.totalorder %s27, %s30
      %p39 = scmp.eq.s32.totalorder %s22, 1
      %p40 = por %p38, %p39
      %p41 = scmp.ne.s32.totalorder %s30, %s31
      %p42 = scmp.eq.s32.totalorder %s22, 0
      %p43 = por %p41, %p42
      %p44 = scmp.ne.s32.totalorder %s30, %s31
      %p45 = scmp.eq.s32.totalorder %s23, 1
      %p46 = por %p44, %p45
      %p48 = scmp.ne.s32.totalorder %s31, %s47
      %p49 = scmp.eq.s32.totalorder %s23, 0
      %p50 = por %p48, %p49
      %s51 = ssub.s32 %s17, %s24
      %p52 = scmp.eq.s32.totalorder %s51, 0
      %s54 = sadd.s32 %s53, 1
      %s55 = scalar_select %p52, %s53, %s54
      %p58 = pneg %p52
      %p59 = scmp.eq.s32.totalorder %s17, 1
      %p60 = por %p58, %p59
      %p61 = scmp.ne.s32.totalorder %s53, %s56
      %p62 = scmp.eq.s32.totalorder %s17, 0
      %p63 = por %p61, %p62
      %p64 = scmp.ne.s32.totalorder %s53, %s56
      %p65 = scmp.eq.s32.totalorder %s22, 1
      %p66 = por %p64, %p65
      %p67 = scmp.ne.s32.totalorder %s56, %s57
      %p68 = scmp.eq.s32.totalorder %s22, 0
      %p69 = por %p67, %p68
      %p70 = scmp.ne.s32.totalorder %s56, %s57
      %p71 = scmp.eq.s32.totalorder %s23, 1
      %p72 = por %p70, %p71
      %p74 = scmp.ne.s32.totalorder %s57, %s73
      %p75 = scmp.eq.s32.totalorder %s23, 0
      %p76 = por %p74, %p75
      %s78 = sadd.s32 %s77, 1
      %p81 = scmp.eq.s32.totalorder %s17, 1
      %p82 = scmp.ne.s32.totalorder %s77, %s79
      %p83 = scmp.eq.s32.totalorder %s17, 0
      %p84 = por %p82, %p83
      %p85 = scmp.ne.s32.totalorder %s77, %s79
      %p86 = scmp.eq.s32.totalorder %s22, 1
      %p87 = por %p85, %p86
      %p88 = scmp.ne.s32.totalorder %s79, %s80
      %p89 = scmp.eq.s32.totalorder %s22, 0
      %p90 = por %p88, %p89
      %p91 = scmp.ne.s32.totalorder %s79, %s80
      %p92 = scmp.eq.s32.totalorder %s23, 1
      %p93 = por %p91, %p92
      %p95 = scmp.ne.s32.totalorder %s80, %s94
      %p96 = scmp.eq.s32.totalorder %s23, 0
      %p97 = por %p95, %p96
      %s98 = ssub.s32 %s17, %s24
      %p99 = scmp.eq.s32.totalorder %s98, 0
      %s101 = sadd.s32 %s100, 1
      %s102 = scalar_select %p99, %s100, %s101
      %p105 = pneg %p99
      %p106 = scmp.eq.s32.totalorder %s17, 1
      %p107 = por %p105, %p106
      %p108 = scmp.ne.s32.totalorder %s100, %s103
      %p109 = scmp.eq.s32.totalorder %s17, 0
      %p110 = por %p108, %p109
      %p111 = scmp.ne.s32.totalorder %s100, %s103
      %p112 = scmp.eq.s32.totalorder %s22, 1
      %p113 = por %p111, %p112
      %p114 = scmp.ne.s32.totalorder %s103, %s104
      %p115 = scmp.eq.s32.totalorder %s22, 0
      %p116 = por %p114, %p115
      %p117 = scmp.ne.s32.totalorder %s103, %s104
      %p118 = scmp.eq.s32.totalorder %s23, 1
      %p119 = por %p117, %p118
      %p121 = scmp.ne.s32.totalorder %s104, %s120
      %p122 = scmp.eq.s32.totalorder %s23, 0
      %p123 = por %p121, %p122
      %s124 = ssub.s32 %s17, %s24
      %p125 = scmp.eq.s32.totalorder %s124, 0
      %s127 = sadd.s32 %s126, 1
      %s128 = scalar_select %p125, %s126, %s127
      %p131 = pneg %p125
      %p132 = scmp.eq.s32.totalorder %s17, 1
      %p133 = por %p131, %p132
      %p134 = scmp.ne.s32.totalorder %s126, %s129
      %p135 = scmp.eq.s32.totalorder %s17, 0
      %p136 = por %p134, %p135
      %p137 = scmp.ne.s32.totalorder %s126, %s129
      %p138 = scmp.eq.s32.totalorder %s22, 1
      %p139 = por %p137, %p138
      %p140 = scmp.ne.s32.totalorder %s129, %s130
      %p141 = scmp.eq.s32.totalorder %s22, 0
      %p142 = por %p140, %p141
      %p143 = scmp.ne.s32.totalorder %s129, %s130
      %p144 = scmp.eq.s32.totalorder %s23, 1
      %p145 = por %p143, %p144
      %p147 = scmp.ne.s32.totalorder %s130, %s146
      %p148 = scmp.eq.s32.totalorder %s23, 0
      %p149 = por %p147, %p148
      %p150 = scmp.le.s32.totalorder 1, %s17
      %p151 = scmp.lt.s32.totalorder %s17, 3
      %p152 = pnand %p150, %p151
      %p153 = pneg %p152
      // Predicated region
      $region9: #{tpu_custom_call.1} parent=5 // pred_check
        _
      $region10: #{tpu_custom_call.1} parent=5 // pred_check_branch
        %155 = sbr.rel (%p152) target = $region12
      $region11: #{tpu_custom_call.1} parent=5 // pred_region
        %s156 = ssub.s32 %s17, 1
        // Predicated region
        $region13: #{tpu_custom_call.1} parent=11 // pred_check
          %p157 = pneg %p90
        $region14: #{tpu_custom_call.1} parent=11 // pred_check_branch
          %159 = sbr.rel (%p157) target = $region16
        $region15: #{tpu_custom_call.1} parent=11 // pred_region
          _
        $region16: #{tpu_custom_call.1} parent=11 // pred_fallthru
          _
      $region12: #{tpu_custom_call.1} parent=5 // pred_fallthru
        _
      %p160 = scmp.lt.s32.totalorder %s17, 2
      // Predicated region
      $region17: #{tpu_custom_call.1} parent=5 // pred_check
        %p161 = pneg %p160
      $region18: #{tpu_custom_call.1} parent=5 // pred_check_branch
        %163 = sbr.rel (%p161) target = $region20
      $region19: #{tpu_custom_call.1} parent=5 // pred_region
        // Predicated region
        $region21: #{tpu_custom_call.1} parent=19 // pred_check
          %p164 = pneg %p37
        $region22: #{tpu_custom_call.1} parent=19 // pred_check_branch
          %166 = sbr.rel (%p164) target = $region24
        $region23: #{tpu_custom_call.1} parent=19 // pred_region
          %s167 = sand.u32 %s27, 1
          %s168 = sand.u32 %s27, 1
          %s169 = smul.addr %s168, 56
          %s170 = scalar_lea.vmem [#allocation2], %s169
          %s171 = smul.addr %s17, 8
          %s172 = scalar_lea.vmem %s0, %s171
          // Predicated region
          $region25: #{tpu_custom_call.1} parent=23 // pred_check
            _
          $region26: #{tpu_custom_call.1} parent=23 // pred_check_branch
            %174 = sbr.rel (0) target = $region28
          $region27: #{tpu_custom_call.1} parent=23 // pred_region
            // Predicated region
            $region29: #{tpu_custom_call.1} parent=27 // pred_check
              _
            $region30: #{tpu_custom_call.1} parent=27 // pred_check_branch
              %176 = sbr.rel (0) target = $region32
            $region31: #{tpu_custom_call.1} parent=27 // pred_region
              // Predicated region
              $region44: #{tpu_custom_call.1} parent=31 // pred_check
                _
              $region45: #{tpu_custom_call.1} parent=31 // pred_check_branch
                %204 = sbr.rel (0) target = $region47
              $region46: #{tpu_custom_call.1} parent=31 // pred_region
                loop: start=0, step=1, limit=1
                $region48: #{tpu_custom_call.1} parent=46 // loop_pre_header
                  _
                $region49: #{tpu_custom_call.1} parent=46 // loop_header
                  %s206 = sphi 0, %s210
                  %p207 = scmp.ge.s32.totalorder %s206, 1
                  %s211 = sphi %s172, %s172
                  %s212 = sphi %s170, %s170
                $region50: #{tpu_custom_call.1} parent=46 // loop_header_branch
                  %209 = sbr.rel (%p207) target = $region54
                $region51: #{tpu_custom_call.1} parent=46 // loop_body
                  %v213 = vld [vmem:[%s211] sm:$0xff]
                  %214 = vst [vmem:[%s212] sm:$0xff] %v213
                  %v215 = vld [vmem:[%s211 + $0x10] sm:$0xff]
                  %216 = vst [vmem:[%s212 + $0x8] sm:$0xff] %v215
                  %v217 = vld [vmem:[%s211 + $0x20] sm:$0xff]
                  %218 = vst [vmem:[%s212 + $0x10] sm:$0xff] %v217
                  %v219 = vld [vmem:[%s211 + $0x30] sm:$0xff]
                  %220 = vst [vmem:[%s212 + $0x18] sm:$0xff] %v219
                  %v221 = vld [vmem:[%s211 + $0x40] sm:$0xff]
                  %222 = vst [vmem:[%s212 + $0x20] sm:$0xff] %v221
                  %v223 = vld [vmem:[%s211 + $0x50] sm:$0xff]
                  %224 = vst [vmem:[%s212 + $0x28] sm:$0xff] %v223
                  %v225 = vld [vmem:[%s211 + $0x60] sm:$0xff]
                  %226 = vst [vmem:[%s212 + $0x30] sm:$0xff] %v225
                $region52: #{tpu_custom_call.1} parent=46 // loop_footer
                  %s210 = sadd.s32 1, %s206
                $region53: #{tpu_custom_call.1} parent=46 // loop_footer_branch
                  %205 = sbr.rel target = $region49
                $region54: #{tpu_custom_call.1} parent=46 // loop_exit
                  _
              $region47: #{tpu_custom_call.1} parent=31 // pred_fallthru
                _
              // Predicated region
              $region55: #{tpu_custom_call.1} parent=31 // pred_check
                _
              $region56: #{tpu_custom_call.1} parent=31 // pred_check_branch
                %228 = sbr.rel target = $region58
              $region57: #{tpu_custom_call.1} parent=31 // pred_region
                _
              $region58: #{tpu_custom_call.1} parent=31 // pred_fallthru
                _
            $region32: #{tpu_custom_call.1} parent=27 // pred_fallthru
              _
            // Predicated region
            $region33: #{tpu_custom_call.1} parent=27 // pred_check
              _
            $region34: #{tpu_custom_call.1} parent=27 // pred_check_branch
              %178 = sbr.rel target = $region36
            $region35: #{tpu_custom_call.1} parent=27 // pred_region
              %s180 = ssub.s32 256, 1
              loop: start=0, step=1, limit=1
              $region37: #{tpu_custom_call.1} parent=35 // loop_pre_header
                _
              $region38: #{tpu_custom_call.1} parent=35 // loop_header
                %s182 = sphi 0, %s186
                %p183 = scmp.ge.s32.totalorder %s182, 1
                %s187 = sphi %s172, %s172
                %s188 = sphi %s170, %s170
              $region39: #{tpu_custom_call.1} parent=35 // loop_header_branch
                %185 = sbr.rel (%p183) target = $region43
              $region40: #{tpu_custom_call.1} parent=35 // loop_body
                %v189 = vld [vmem:[%s187] sm:%s180]
                %190 = vst [vmem:[%s188] sm:%s180] %v189
                %v191 = vld [vmem:[%s187 + $0x10] sm:%s180]
                %192 = vst [vmem:[%s188 + $0x8] sm:%s180] %v191
                %v193 = vld [vmem:[%s187 + $0x20] sm:%s180]
                %194 = vst [vmem:[%s188 + $0x10] sm:%s180] %v193
                %v195 = vld [vmem:[%s187 + $0x30] sm:%s180]
                %196 = vst [vmem:[%s188 + $0x18] sm:%s180] %v195
                %v197 = vld [vmem:[%s187 + $0x40] sm:%s180]
                %198 = vst [vmem:[%s188 + $0x20] sm:%s180] %v197
                %v199 = vld [vmem:[%s187 + $0x50] sm:%s180]
                %200 = vst [vmem:[%s188 + $0x28] sm:%s180] %v199
                %v201 = vld [vmem:[%s187 + $0x60] sm:%s180]
                %202 = vst [vmem:[%s188 + $0x30] sm:%s180] %v201
              $region41: #{tpu_custom_call.1} parent=35 // loop_footer
                %s186 = sadd.s32 1, %s182
              $region42: #{tpu_custom_call.1} parent=35 // loop_footer_branch
                %181 = sbr.rel target = $region38
              $region43: #{tpu_custom_call.1} parent=35 // loop_exit
                _
            $region36: #{tpu_custom_call.1} parent=27 // pred_fallthru
              _
          $region28: #{tpu_custom_call.1} parent=23 // pred_fallthru
            _
          %229 = vnop
        $region24: #{tpu_custom_call.1} parent=19 // pred_fallthru
          _
        // Predicated region
        $region59: #{tpu_custom_call.1} parent=19 // pred_check
          %p230 = pneg %p63
        $region60: #{tpu_custom_call.1} parent=19 // pred_check_branch
          %232 = sbr.rel (%p230) target = $region62
        $region61: #{tpu_custom_call.1} parent=19 // pred_region
          %p233 = scmp.lt.s32.totalorder %s17, 1
          %s234 = scalar_select %p233, %s17, 1
          %s235 = smul.addr %s234, 4
          %s236 = scalar_lea.vmem %s1, %s235
        $region62: #{tpu_custom_call.1} parent=19 // pred_fallthru
          _
      $region20: #{tpu_custom_call.1} parent=5 // pred_fallthru
        _
      %p237 = scmp.le.s32.totalorder 1, %s17
      %p238 = scmp.lt.s32.totalorder %s17, 3
      %p239 = pnand %p237, %p238
      %p240 = pneg %p239
      // Predicated region
      $region63: #{tpu_custom_call.1} parent=5 // pred_check
        _
      $region64: #{tpu_custom_call.1} parent=5 // pred_check_branch
        %242 = sbr.rel (%p239) target = $region66
      $region65: #{tpu_custom_call.1} parent=5 // pred_region
        %s243 = ssub.s32 %s17, 1
        %s244 = sand.u32 %s30, 1
        %s245 = sand.u32 %s30, 1
        %s246 = smul.addr %s245, 56
        %s247 = scalar_lea.vmem [#allocation2], %s246
        // Predicated region
        $region67: #{tpu_custom_call.1} parent=65 // pred_check
          %p248 = pneg %p43
        $region68: #{tpu_custom_call.1} parent=65 // pred_check_branch
          %250 = sbr.rel (%p248) target = $region70
        $region69: #{tpu_custom_call.1} parent=65 // pred_region
          _
        $region70: #{tpu_custom_call.1} parent=65 // pred_fallthru
          _
        %s251 = sand.u32 %s30, 1
        %s252 = sand.u32 %s30, 1
        %s253 = smul.addr %s252, 56
        %s254 = scalar_lea.vmem [#allocation2], %s253
        %p255 = pneg %p43
        %p256 = pneg %p40
        %p257 = scmp.lt.s32.totalorder %s22, 1
        %s258 = scalar_select %p257, %s22, 1
        %s259 = smul.addr %s258, 4
        %s260 = scalar_lea.vmem %s1, %s259
        %p261 = pneg %p69
        %p262 = pneg %p66
        %p263 = pneg %p90
        %p264 = pneg %p87
        %p265 = pneg %p116
        %p266 = pneg %p113
        %s267 = sand.u32 %s103, 1
        %s268 = scalar_lea.sflag [#allocation4], %s267
        %s269 = sand.u32 %s103, 1
        %s270 = smul.addr %s269, 48
        %s271 = scalar_lea.vmem [#allocation3], %s270
        %p272 = pneg %p142
        %p273 = pneg %p139
        %s274 = sand.u32 %s129, 1
        %s275 = scalar_lea.sflag [#allocation6], %s274
        %s276 = sand.u32 %s129, 1
        %s277 = scalar_lea.vmem [#allocation5], %s276
        %p278 = scmp.lt.s32.totalorder %s22, 1
        %s279 = scalar_select %p278, %s22, 1
        %s280 = smul.addr %s279, 4
        %s281 = scalar_lea.vmem %s1, %s280
        %v283 = vld [vmem:[%s247] sm:$0xff]
        %v284 = vld [vmem:[%s247 + $0x8] sm:$0xff]
        %v285 = vld [vmem:[%s247 + $0x10] sm:$0xff]
        %v286 = vld [vmem:[%s247 + $0x18] sm:$0xff]
        %v287 = vld [vmem:[%s247 + $0x20] sm:$0xff]
        %v288 = vld [vmem:[%s247 + $0x28] sm:$0xff]
        %v289 = vpack.c.bf16 %v284, %v283
        %v290 = vpack.c.bf16 %v286, %v285
        %v291 = vpack.c.bf16 %v288, %v287
        %v292 = vld [vmem:[%s2] sm:$0xf]
        %v293 = vld [vmem:[%s2 + $0x4] sm:$0xf]
        %v294 = vld [vmem:[%s2 + $0x8] sm:$0xf]
        %v295 = vld [vmem:[%s2 + $0xc] sm:$0xf]
        %v296 = vld [vmem:[%s2 + $0x10] sm:$0xf]
        %v297 = vld [vmem:[%s2 + $0x14] sm:$0xf]
        %v298 = vld [vmem:[%s2 + $0x70] sm:$0xf]
        %v299 = vld [vmem:[%s2 + $0x74] sm:$0xf]
        %v300 = vld [vmem:[%s2 + $0x78] sm:$0xf]
        %v301 = vld [vmem:[%s2 + $0x7c] sm:$0xf]
        %v302 = vld [vmem:[%s2 + $0x80] sm:$0xf]
        %v303 = vld [vmem:[%s2 + $0x84] sm:$0xf]
        %v304 = vunpack.c.l.bf16 %v298
        %v305 = vunpack.c.l.bf16 %v299
        %v306 = vunpack.c.l.bf16 %v300
        %v307 = vunpack.c.l.bf16 %v301
        %v308 = vunpack.c.l.bf16 %v302
        %v309 = vunpack.c.l.bf16 %v303
        %311 = vset.pattern.permute.xlu0 0
        %312 = vperm.xlu0 %311, %v304
        %v313 = vpop.permute.xlu0 %312
        %316 = vset.pattern.permute.xlu0 0
        %317 = vperm.xlu0 %316, %v305
        %v318 = vpop.permute.xlu0 %317
        %321 = vset.pattern.permute.xlu0 0
        %322 = vperm.xlu0 %321, %v306
        %v323 = vpop.permute.xlu0 %322
        %326 = vset.pattern.permute.xlu0 0
        %327 = vperm.xlu0 %326, %v307
        %v328 = vpop.permute.xlu0 %327
        %331 = vset.pattern.permute.xlu0 0
        %332 = vperm.xlu0 %331, %v308
        %v333 = vpop.permute.xlu0 %332
        %336 = vset.pattern.permute.xlu0 0
        %337 = vperm.xlu0 %336, %v309
        %v338 = vpop.permute.xlu0 %337
        %v346 = vunpack.c.l.b16 %v292
        %v347 = vunpack.c.l.b16 %v293
        %v348 = vunpack.c.l.b16 %v294
        %v349 = vunpack.c.l.b16 %v295
        %v350 = vunpack.c.l.b16 %v296
        %v351 = vunpack.c.l.b16 %v297
        %v352 = vpack.c.b16 %v347, %v346
        %v353 = vpack.c.b16 %v349, %v348
        %v354 = vpack.c.b16 %v351, %v350
        %vm355 = vcmask 392192
        %v357 = vsel %vm355, %v352, 0
        %v360 = vsel %vm355, %v353, 0
        %v363 = vsel %vm355, %v354, 0
        %365 = vmatprep.subr.bf16.mxu0 0
        %366 = vmatpush1.bf16.msra.mxu0 0
        %367 = vmatprep.subr.bf16.mxu0 0
        %368 = vmatpush1.bf16.msra.mxu0 0
        %369 = vmatprep.subr.bf16.mxu0 0
        %370 = vmatpush1.bf16.msra.mxu0 0
        %371 = vmatprep.subr.bf16.mxu0 0
        %372 = vmatpush1.bf16.msra.mxu0 0
        %373 = vmatprep.subr.bf16.mxu0 0
        %374 = vmatpush1.bf16.msra.mxu0 0
        %375 = vmatprep.subr.bf16.mxu0 0
        %376 = vmatpush1.bf16.msra.mxu0 %v291
        %377 = vmatprep.subr.bf16.mxu0 0
        %378 = vmatpush1.bf16.msra.mxu0 %v290
        %379 = vmatprep.subr.bf16.mxu0 0
        %380 = vmatpush1.bf16.msra.mxu0 %v289
        %381 = vmatprep.subr.bf16.mxu0 0
        %382 = vmatpush2.bf16.msra.mxu0 0
        %383 = vmatprep.subr.bf16.mxu0 0
        %384 = vmatpush2.bf16.msra.mxu0 0
        %385 = vmatprep.subr.bf16.mxu0 0
        %386 = vmatpush2.bf16.msra.mxu0 0
        %387 = vmatprep.subr.bf16.mxu0 0
        %388 = vmatpush2.bf16.msra.mxu0 0
        %389 = vmatprep.subr.bf16.mxu0 0
        %390 = vmatpush2.bf16.msra.mxu0 0
        %391 = vmatprep.subr.bf16.mxu0 0
        %392 = vmatpush2.bf16.msra.mxu0 0
        %393 = vmatprep.subr.bf16.mxu0 0
        %394 = vmatpush2.bf16.msra.mxu0 0
        %395 = vmatprep.subr.bf16.mxu0 0
        %396 = vmatpush2.bf16.msra.mxu0 0
        %397 = vmatprep.mubr.bf16.mxu0 0
        %398 = vmatmul.mubr.bf16.gmra.mxu0 %v357
        %v399 = vpop.f32.mrf.mxu0
        %v400 = vadd.f32 %v313, %v399
        %v401 = vpop.f32.mrf.mxu0
        %v402 = vpop.f32.mrf.mxu0
        %v403 = vadd.f32 %v318, %v402
        %v404 = vpop.f32.mrf.mxu0
        %405 = vmatprep.mubr.bf16.mxu0 0
        %406 = vmatmul.mubr.bf16.gmra.mxu0 %v360
        %v407 = vpop.f32.mrf.mxu0
        %v408 = vadd.f32 %v323, %v407
        %v409 = vpop.f32.mrf.mxu0
        %v410 = vpop.f32.mrf.mxu0
        %v411 = vadd.f32 %v328, %v410
        %v412 = vpop.f32.mrf.mxu0
        %413 = vmatprep.mubr.bf16.mxu0 0
        %414 = vmatmul.mubr.bf16.gmra.mxu0 %v363
        %v415 = vpop.f32.mrf.mxu0
        %v416 = vadd.f32 %v333, %v415
        %v417 = vpop.f32.mrf.mxu0
        %v418 = vpop.f32.mrf.mxu0
        %v419 = vadd.f32 %v338, %v418
        %v420 = vpop.f32.mrf.mxu0
        %421 = vdwg.mxu0
        %v422 = vmax.f32 %v400, 0.0
        %v423 = vmax.f32 %v403, 0.0
        %v424 = vmax.f32 %v408, 0.0
        %v425 = vmax.f32 %v411, 0.0
        %v426 = vmax.f32 %v416, 0.0
        %v427 = vmax.f32 %v419, 0.0
        %v428 = vpack.c.bf16 %v423, %v422
        %v429 = vpack.c.bf16 %v425, %v424
        %v430 = vpack.c.bf16 %v427, %v426
        %v431 = vld [vmem:[%s2 + $0x18] sm:$0xf]
        %v432 = vld [vmem:[%s2 + $0x1c] sm:$0xf]
        %v433 = vld [vmem:[%s2 + $0x20] sm:$0xf]
        %v434 = vld [vmem:[%s2 + $0x70] sm:$0xf]
        %v435 = vld [vmem:[%s2 + $0x74] sm:$0xf]
        %v436 = vld [vmem:[%s2 + $0x78] sm:$0xf]
        %v437 = vunpack.c.l.bf16 %v434
        %v438 = vunpack.c.l.bf16 %v435
        %v439 = vunpack.c.l.bf16 %v436
        %441 = vset.pattern.permute.xlu0 1
        %442 = vperm.xlu0 %441, %v437
        %v443 = vpop.permute.xlu0 %442
        %446 = vset.pattern.permute.xlu0 1
        %447 = vperm.xlu0 %446, %v438
        %v448 = vpop.permute.xlu0 %447
        %451 = vset.pattern.permute.xlu0 1
        %452 = vperm.xlu0 %451, %v439
        %v453 = vpop.permute.xlu0 %452
        %v458 = vunpack.c.l.b16 %v431
        %v459 = vunpack.c.l.b16 %v432
        %v460 = vunpack.c.l.b16 %v433
        %v461 = vpack.c.b16 %v459, %v458
        %v462 = vpack.c.b16 %v460, %v460
        %v464 = vsel %vm355, %v461, 0
        %v467 = vsel %vm355, %v462, 0
        %469 = vmatprep.subr.bf16.mxu0 0
        %470 = vmatpush1.bf16.msra.mxu0 0
        %471 = vmatprep.subr.bf16.mxu0 0
        %472 = vmatpush1.bf16.msra.mxu0 0
        %473 = vmatprep.subr.bf16.mxu0 0
        %474 = vmatpush1.bf16.msra.mxu0 0
        %475 = vmatprep.subr.bf16.mxu0 0
        %476 = vmatpush1.bf16.msra.mxu0 0
        %477 = vmatprep.subr.bf16.mxu0 0
        %478 = vmatpush1.bf16.msra.mxu0 0
        %479 = vmatprep.subr.bf16.mxu0 0
        %480 = vmatpush1.bf16.msra.mxu0 %v430
        %481 = vmatprep.subr.bf16.mxu0 0
        %482 = vmatpush1.bf16.msra.mxu0 %v429
        %483 = vmatprep.subr.bf16.mxu0 0
        %484 = vmatpush1.bf16.msra.mxu0 %v428
        %485 = vmatprep.subr.bf16.mxu0 0
        %486 = vmatpush2.bf16.msra.mxu0 0
        %487 = vmatprep.subr.bf16.mxu0 0
        %488 = vmatpush2.bf16.msra.mxu0 0
        %489 = vmatprep.subr.bf16.mxu0 0
        %490 = vmatpush2.bf16.msra.mxu0 0
        %491 = vmatprep.subr.bf16.mxu0 0
        %492 = vmatpush2.bf16.msra.mxu0 0
        %493 = vmatprep.subr.bf16.mxu0 0
        %494 = vmatpush2.bf16.msra.mxu0 0
        %495 = vmatprep.subr.bf16.mxu0 0
        %496 = vmatpush2.bf16.msra.mxu0 0
        %497 = vmatprep.subr.bf16.mxu0 0
        %498 = vmatpush2.bf16.msra.mxu0 0
        %499 = vmatprep.subr.bf16.mxu0 0
        %500 = vmatpush2.bf16.msra.mxu0 0
        %501 = vmatprep.mubr.bf16.mxu0 0
        %502 = vmatmul.mubr.bf16.gmra.mxu0 %v464
        %v503 = vpop.f32.mrf.mxu0
        %v504 = vadd.f32 %v443, %v503
        %v505 = vpop.f32.mrf.mxu0
        %v506 = vpop.f32.mrf.mxu0
        %v507 = vadd.f32 %v448, %v506
        %v508 = vpop.f32.mrf.mxu0
        %509 = vmatprep.mubr.bf16.mxu0 0
        %510 = vmatmul.mubr.bf16.gmra.mxu0 %v467
        %v511 = vpop.f32.mrf.mxu0
        %v512 = vadd.f32 %v453, %v511
        %v513 = vpop.f32.mrf.mxu0
        %v514 = vpop.f32.mrf.mxu0
        %v515 = vpop.f32.mrf.mxu0
        %516 = vdwg.mxu0
        %v517 = vmax.f32 %v504, 0.0
        %v518 = vmax.f32 %v507, 0.0
        %v519 = vmax.f32 %v512, 0.0
        %v520 = vpack.c.bf16 %v518, %v517
        %v521 = vpack.c.bf16 %v519, %v519
        %v522 = vld [vmem:[%s2 + $0x28] sm:$0xf]
        %v523 = vld [vmem:[%s2 + $0x2c] sm:$0x3]
        %v524 = vld [vmem:[%s2 + $0x70] sm:$0xf]
        %v525 = vld [vmem:[%s2 + $0x74] sm:$0x3]
        %v526 = vunpack.c.l.bf16 %v524
        %v527 = vunpack.c.l.bf16 %v525
        %529 = vset.pattern.permute.xlu0 2
        %530 = vperm.xlu0 %529, %v526
        %v531 = vpop.permute.xlu0 %530
        %534 = vset.pattern.permute.xlu0 2
        %535 = vperm.xlu0 %534, %v527
        %v536 = vpop.permute.xlu0 %535
        %v540 = vunpack.c.l.b16 %v522
        %v541 = vunpack.c.l.b16 %v523
        %v542 = vpack.c.b16 %v541, %v540
        %vm543 = vcmask 195584
        %v545 = vsel %vm543, %v542, 0
        %vm547 = vcmask 1043456
        %v549 = vsel %vm547, %v521, 0
        %551 = vmatprep.subr.bf16.mxu0 0
        %552 = vmatpush1.bf16.msra.mxu0 0
        %553 = vmatprep.subr.bf16.mxu0 0
        %554 = vmatpush1.bf16.msra.mxu0 0
        %555 = vmatprep.subr.bf16.mxu0 0
        %556 = vmatpush1.bf16.msra.mxu0 0
        %557 = vmatprep.subr.bf16.mxu0 0
        %558 = vmatpush1.bf16.msra.mxu0 0
        %559 = vmatprep.subr.bf16.mxu0 0
        %560 = vmatpush1.bf16.msra.mxu0 0
        %561 = vmatprep.subr.bf16.mxu0 0
        %562 = vmatpush1.bf16.msra.mxu0 0
        %563 = vmatprep.subr.bf16.mxu0 0
        %564 = vmatpush1.bf16.msra.mxu0 %v549
        %565 = vmatprep.subr.bf16.mxu0 0
        %566 = vmatpush1.bf16.msra.mxu0 %v520
        %567 = vmatprep.subr.bf16.mxu0 0
        %568 = vmatpush2.bf16.msra.mxu0 0
        %569 = vmatprep.subr.bf16.mxu0 0
        %570 = vmatpush2.bf16.msra.mxu0 0
        %571 = vmatprep.subr.bf16.mxu0 0
        %572 = vmatpush2.bf16.msra.mxu0 0
        %573 = vmatprep.subr.bf16.mxu0 0
        %574 = vmatpush2.bf16.msra.mxu0 0
        %575 = vmatprep.subr.bf16.mxu0 0
        %576 = vmatpush2.bf16.msra.mxu0 0
        %577 = vmatprep.subr.bf16.mxu0 0
        %578 = vmatpush2.bf16.msra.mxu0 0
        %579 = vmatprep.subr.bf16.mxu0 0
        %580 = vmatpush2.bf16.msra.mxu0 0
        %581 = vmatprep.subr.bf16.mxu0 0
        %582 = vmatpush2.bf16.msra.mxu0 0
        %583 = vmatprep.mubr.bf16.mxu0 0
        %584 = vmatmul.mubr.bf16.gmra.mxu0 %v545
        %v585 = vpop.f32.mrf.mxu0
        %v586 = vadd.f32 %v531, %v585
        %v587 = vpop.f32.mrf.mxu0
        %v588 = vpop.f32.mrf.mxu0
        %v589 = vadd.f32 %v536, %v588
        %v590 = vpop.f32.mrf.mxu0
        %591 = vdwg.mxu0
        %v592 = vmax.f32 %v586, 0.0
        %v593 = vmax.f32 %v589, 0.0
        %v594 = vpack.c.bf16 %v593, %v592
        %v595 = vld [vmem:[%s2 + $0x30] sm:$0xf]
        %v596 = vld [vmem:[%s2 + $0x34] sm:$0xf]
        %v597 = vld [vmem:[%s2 + $0x38] sm:$0x1]
        %v598 = vld [vmem:[%s2 + $0x78] sm:$0x1]
        %v599 = vunpack.c.l.bf16 %v598
        %600 = vset.pattern.permute.xlu0 3
        %601 = vperm.xlu0 %600, %v437
        %v602 = vpop.permute.xlu0 %601
        %604 = vset.pattern.permute.xlu0 3
        %605 = vperm.xlu0 %604, %v438
        %v606 = vpop.permute.xlu0 %605
        %609 = vset.pattern.permute.xlu0 3
        %610 = vperm.xlu0 %609, %v599
        %v611 = vpop.permute.xlu0 %610
        %v616 = vunpack.c.l.b16 %v595
        %v617 = vunpack.c.l.b16 %v596
        %v618 = vunpack.c.l.b16 %v597
        %v619 = vpack.c.b16 %v617, %v616
        %v620 = vpack.c.b16 %v618, %v618
        %vm621 = vcmask 97280
        %v623 = vsel %vm621, %v619, 0
        %v626 = vsel %vm621, %v620, 0
        %vm628 = vcmask 1045504
        %v630 = vsel %vm628, %v594, 0
        %632 = vmatprep.subr.bf16.mxu0 0
        %633 = vmatpush1.bf16.msra.mxu0 0
        %634 = vmatprep.subr.bf16.mxu0 0
        %635 = vmatpush1.bf16.msra.mxu0 0
        %636 = vmatprep.subr.bf16.mxu0 0
        %637 = vmatpush1.bf16.msra.mxu0 0
        %638 = vmatprep.subr.bf16.mxu0 0
        %639 = vmatpush1.bf16.msra.mxu0 0
        %640 = vmatprep.subr.bf16.mxu0 0
        %641 = vmatpush1.bf16.msra.mxu0 0
        %642 = vmatprep.subr.bf16.mxu0 0
        %643 = vmatpush1.bf16.msra.mxu0 0
        %644 = vmatprep.subr.bf16.mxu0 0
        %645 = vmatpush1.bf16.msra.mxu0 0
        %646 = vmatprep.subr.bf16.mxu0 0
        %647 = vmatpush1.bf16.msra.mxu0 %v630
        %648 = vmatprep.subr.bf16.mxu0 0
        %649 = vmatpush2.bf16.msra.mxu0 0
        %650 = vmatprep.subr.bf16.mxu0 0
        %651 = vmatpush2.bf16.msra.mxu0 0
        %652 = vmatprep.subr.bf16.mxu0 0
        %653 = vmatpush2.bf16.msra.mxu0 0
        %654 = vmatprep.subr.bf16.mxu0 0
        %655 = vmatpush2.bf16.msra.mxu0 0
        %656 = vmatprep.subr.bf16.mxu0 0
        %657 = vmatpush2.bf16.msra.mxu0 0
        %658 = vmatprep.subr.bf16.mxu0 0
        %659 = vmatpush2.bf16.msra.mxu0 0
        %660 = vmatprep.subr.bf16.mxu0 0
        %661 = vmatpush2.bf16.msra.mxu0 0
        %662 = vmatprep.subr.bf16.mxu0 0
        %663 = vmatpush2.bf16.msra.mxu0 0
        %664 = vmatprep.mubr.bf16.mxu0 0
        %665 = vmatmul.mubr.bf16.gmra.mxu0 %v623
        %v666 = vpop.f32.mrf.mxu0
        %v667 = vadd.f32 %v602, %v666
        %v668 = vpop.f32.mrf.mxu0
        %v669 = vpop.f32.mrf.mxu0
        %v670 = vadd.f32 %v606, %v669
        %v671 = vpop.f32.mrf.mxu0
        %672 = vmatprep.mubr.bf16.mxu0 0
        %673 = vmatmul.mubr.bf16.gmra.mxu0 %v626
        %v674 = vpop.f32.mrf.mxu0
        %v675 = vadd.f32 %v611, %v674
        %v676 = vpop.f32.mrf.mxu0
        %v677 = vpop.f32.mrf.mxu0
        %v678 = vpop.f32.mrf.mxu0
        %679 = vdwg.mxu0
        %v680 = vmul.f32 %v667, 0.5
        %v681 = vmul.f32 %v680, 1.442695
        %v682 = vpow.pop %v681
        %v683 = vsub.f32 -0.5, %v667
        %v684 = vmul.f32 %v667, %v667
        %v686 = vrot.slane %v684, 3
        %v688 = vadd.f32 %v683, %v686
        %v689 = vmul.f32 %v682, %v682
        %v690 = vadd.f32 %v688, %v689
        %vm691 = vcmask 1042432
        %v692 = vsel %vm691, %v690, 0.0
        %v693 = vrot.slane %v692, 4
        %v694 = vadd.f32 %v692, %v693
        %v695 = vrot.slane %v694, 2
        %v696 = vadd.f32 %v694, %v695
        %v697 = vrot.slane %v696, 1
        %v698 = vadd.f32 %v696, %v697
        %699 = vst [vmem:[%s277] sm:$0x1] %v698
        %v700 = vld [vmem:[%s281] sm:$0x7]
        %v701 = vmul.f32 %v682, %v700
        %v702 = vld [vmem:[%s2 + $0x68] sm:$0xf]
        %v703 = vld [vmem:[%s2 + $0x6c] sm:$0x3]
        %v704 = vunpack.c.l.bf16 %v702
        %v705 = vunpack.c.l.bf16 %v703
        %707 = vset.pattern.permute.xlu0 0
        %708 = vperm.xlu0 %707, %v704
        %v709 = vpop.permute.xlu0 %708
        %712 = vset.pattern.permute.xlu0 0
        %713 = vperm.xlu0 %712, %v705
        %v714 = vpop.permute.xlu0 %713
        %v716 = vlaneseq
        %v717 = vshrl.u32 %v716, 7
        %v718 = vsub.s32 0, %v717
        %v719 = vrot.slane %v701, %v718
        %v720 = vmul.f32 %v709, %v719
        %v721 = vmul.f32 %v714, %v719
        %v724 = vrot.slane %v720, 2
        %v725 = vrot.slane %v721, 2
        %v726 = vsel %vm628, %v724, %v725
        %v730 = vadd.f32 %v667, %v724
        %v731 = vadd.f32 %v670, %v726
        %v732 = vadd.f32 %v675, %v725
        %733 = vset.pattern.permute.xlu0 1
        %734 = vperm.xlu0 %733, %v704
        %v735 = vpop.permute.xlu0 %734
        %737 = vset.pattern.permute.xlu0 1
        %738 = vperm.xlu0 %737, %v705
        %v739 = vpop.permute.xlu0 %738
        %v741 = vlaneseq
        %v742 = vshrl.u32 %v741, 7
        %v743 = vsub.s32 1, %v742
        %v744 = vrot.slane %v701, %v743
        %v745 = vmul.f32 %v735, %v744
        %v746 = vmul.f32 %v739, %v744
        %v749 = vrot.slane %v745, 2
        %v750 = vrot.slane %v746, 2
        %v751 = vsel %vm628, %v749, %v750
        %v755 = vadd.f32 %v730, %v749
        %v756 = vadd.f32 %v731, %v751
        %v757 = vadd.f32 %v732, %v750
        %758 = vset.pattern.permute.xlu0 2
        %759 = vperm.xlu0 %758, %v704
        %v760 = vpop.permute.xlu0 %759
        %762 = vset.pattern.permute.xlu0 2
        %763 = vperm.xlu0 %762, %v705
        %v764 = vpop.permute.xlu0 %763
        %v766 = vlaneseq
        %v767 = vshrl.u32 %v766, 7
        %v768 = vsub.s32 2, %v767
        %v769 = vrot.slane %v701, %v768
        %v770 = vmul.f32 %v760, %v769
        %v771 = vmul.f32 %v764, %v769
        %v774 = vrot.slane %v770, 2
        %v775 = vrot.slane %v771, 2
        %v776 = vsel %vm628, %v774, %v775
        %v780 = vadd.f32 %v755, %v774
        %v781 = vadd.f32 %v756, %v776
        %v782 = vadd.f32 %v757, %v775
        %v783 = vmax.f32 %v780, 0.0
        %v784 = vmax.f32 %v781, 0.0
        %v785 = vmax.f32 %v782, 0.0
        %v786 = vpack.c.bf16 %v784, %v783
        %v787 = vpack.c.bf16 %v785, %v785
        %v788 = vld [vmem:[%s2 + $0x40] sm:$0xf]
        %v789 = vld [vmem:[%s2 + $0x44] sm:$0xf]
        %v790 = vld [vmem:[%s2 + $0x48] sm:$0xf]
        %v791 = vld [vmem:[%s2 + $0x70] sm:$0xf]
        %v792 = vld [vmem:[%s2 + $0x74] sm:$0xf]
        %v793 = vld [vmem:[%s2 + $0x78] sm:$0xf]
        %v794 = vunpack.c.l.bf16 %v791
        %v795 = vunpack.c.l.bf16 %v792
        %v796 = vunpack.c.l.bf16 %v793
        %798 = vset.pattern.permute.xlu0 4
        %799 = vperm.xlu0 %798, %v794
        %v800 = vpop.permute.xlu0 %799
        %803 = vset.pattern.permute.xlu0 4
        %804 = vperm.xlu0 %803, %v795
        %v805 = vpop.permute.xlu0 %804
        %808 = vset.pattern.permute.xlu0 4
        %809 = vperm.xlu0 %808, %v796
        %v810 = vpop.permute.xlu0 %809
        %v815 = vunpack.c.l.b16 %v788
        %v816 = vunpack.c.l.b16 %v789
        %v817 = vunpack.c.l.b16 %v790
        %v818 = vpack.c.b16 %v816, %v815
        %v819 = vpack.c.b16 %v817, %v817
        %vm822 = vcmask 1044480
        %v823 = vrot.slane %v786, 3
        %v824 = vrot.slane %v787, 3
        %v825 = vsel %vm822, %v823, %v824
        %v827 = vsel %vm621, %v818, 0
        %v830 = vsel %vm621, %v819, 0
        %v833 = vsel %vm628, %v825, 0
        %835 = vmatprep.subr.bf16.mxu0 0
        %836 = vmatpush1.bf16.msra.mxu0 0
        %837 = vmatprep.subr.bf16.mxu0 0
        %838 = vmatpush1.bf16.msra.mxu0 0
        %839 = vmatprep.subr.bf16.mxu0 0
        %840 = vmatpush1.bf16.msra.mxu0 0
        %841 = vmatprep.subr.bf16.mxu0 0
        %842 = vmatpush1.bf16.msra.mxu0 0
        %843 = vmatprep.subr.bf16.mxu0 0
        %844 = vmatpush1.bf16.msra.mxu0 0
        %845 = vmatprep.subr.bf16.mxu0 0
        %846 = vmatpush1.bf16.msra.mxu0 0
        %847 = vmatprep.subr.bf16.mxu0 0
        %848 = vmatpush1.bf16.msra.mxu0 0
        %849 = vmatprep.subr.bf16.mxu0 0
        %850 = vmatpush1.bf16.msra.mxu0 %v833
        %851 = vmatprep.subr.bf16.mxu0 0
        %852 = vmatpush2.bf16.msra.mxu0 0
        %853 = vmatprep.subr.bf16.mxu0 0
        %854 = vmatpush2.bf16.msra.mxu0 0
        %855 = vmatprep.subr.bf16.mxu0 0
        %856 = vmatpush2.bf16.msra.mxu0 0
        %857 = vmatprep.subr.bf16.mxu0 0
        %858 = vmatpush2.bf16.msra.mxu0 0
        %859 = vmatprep.subr.bf16.mxu0 0
        %860 = vmatpush2.bf16.msra.mxu0 0
        %861 = vmatprep.subr.bf16.mxu0 0
        %862 = vmatpush2.bf16.msra.mxu0 0
        %863 = vmatprep.subr.bf16.mxu0 0
        %864 = vmatpush2.bf16.msra.mxu0 0
        %865 = vmatprep.subr.bf16.mxu0 0
        %866 = vmatpush2.bf16.msra.mxu0 0
        %867 = vmatprep.mubr.bf16.mxu0 0
        %868 = vmatmul.mubr.bf16.gmra.mxu0 %v827
        %v869 = vpop.f32.mrf.mxu0
        %v870 = vadd.f32 %v800, %v869
        %v871 = vpop.f32.mrf.mxu0
        %v872 = vpop.f32.mrf.mxu0
        %v873 = vadd.f32 %v805, %v872
        %v874 = vpop.f32.mrf.mxu0
        %875 = vmatprep.mubr.bf16.mxu0 0
        %876 = vmatmul.mubr.bf16.gmra.mxu0 %v830
        %v877 = vpop.f32.mrf.mxu0
        %v878 = vadd.f32 %v810, %v877
        %v879 = vpop.f32.mrf.mxu0
        %v880 = vpop.f32.mrf.mxu0
        %v881 = vpop.f32.mrf.mxu0
        %882 = vdwg.mxu0
        %v883 = vmax.f32 %v870, 0.0
        %v884 = vmax.f32 %v873, 0.0
        %v885 = vmax.f32 %v878, 0.0
        %v886 = vpack.c.bf16 %v884, %v883
        %v887 = vpack.c.bf16 %v885, %v885
        %v888 = vld [vmem:[%s2 + $0x50] sm:$0xf]
        %v889 = vld [vmem:[%s2 + $0x54] sm:$0xf]
        %v890 = vld [vmem:[%s2 + $0x58] sm:$0xf]
        %v891 = vld [vmem:[%s2 + $0x5c] sm:$0xf]
        %v892 = vld [vmem:[%s2 + $0x60] sm:$0xf]
        %v893 = vld [vmem:[%s2 + $0x64] sm:$0xf]
        %v894 = vld [vmem:[%s2 + $0x70] sm:$0xf]
        %v895 = vld [vmem:[%s2 + $0x74] sm:$0xf]
        %v896 = vld [vmem:[%s2 + $0x78] sm:$0xf]
        %v897 = vld [vmem:[%s2 + $0x7c] sm:$0xf]
        %v898 = vld [vmem:[%s2 + $0x80] sm:$0xf]
        %v899 = vld [vmem:[%s2 + $0x84] sm:$0xf]
        %v900 = vunpack.c.l.bf16 %v894
        %v901 = vunpack.c.l.bf16 %v895
        %v902 = vunpack.c.l.bf16 %v896
        %v903 = vunpack.c.l.bf16 %v897
        %v904 = vunpack.c.l.bf16 %v898
        %v905 = vunpack.c.l.bf16 %v899
        %907 = vset.pattern.permute.xlu0 5
        %908 = vperm.xlu0 %907, %v900
        %v909 = vpop.permute.xlu0 %908
        %912 = vset.pattern.permute.xlu0 5
        %913 = vperm.xlu0 %912, %v901
        %v914 = vpop.permute.xlu0 %913
        %917 = vset.pattern.permute.xlu0 5
        %918 = vperm.xlu0 %917, %v902
        %v919 = vpop.permute.xlu0 %918
        %922 = vset.pattern.permute.xlu0 5
        %923 = vperm.xlu0 %922, %v903
        %v924 = vpop.permute.xlu0 %923
        %927 = vset.pattern.permute.xlu0 5
        %928 = vperm.xlu0 %927, %v904
        %v929 = vpop.permute.xlu0 %928
        %932 = vset.pattern.permute.xlu0 5
        %933 = vperm.xlu0 %932, %v905
        %v934 = vpop.permute.xlu0 %933
        %v942 = vunpack.c.l.b16 %v888
        %v943 = vunpack.c.l.b16 %v889
        %v944 = vunpack.c.l.b16 %v890
        %v945 = vunpack.c.l.b16 %v891
        %v946 = vunpack.c.l.b16 %v892
        %v947 = vunpack.c.l.b16 %v893
        %v948 = vpack.c.b16 %v943, %v942
        %v949 = vpack.c.b16 %v945, %v944
        %v950 = vpack.c.b16 %v947, %v946
        %v952 = vsel %vm543, %v948, 0
        %v955 = vsel %vm543, %v949, 0
        %v958 = vsel %vm543, %v950, 0
        %v961 = vsel %vm547, %v887, 0
        %963 = vmatprep.subr.bf16.mxu0 0
        %964 = vmatpush1.bf16.msra.mxu0 0
        %965 = vmatprep.subr.bf16.mxu0 0
        %966 = vmatpush1.bf16.msra.mxu0 0
        %967 = vmatprep.subr.bf16.mxu0 0
        %968 = vmatpush1.bf16.msra.mxu0 0
        %969 = vmatprep.subr.bf16.mxu0 0
        %970 = vmatpush1.bf16.msra.mxu0 0
        %971 = vmatprep.subr.bf16.mxu0 0
        %972 = vmatpush1.bf16.msra.mxu0 0
        %973 = vmatprep.subr.bf16.mxu0 0
        %974 = vmatpush1.bf16.msra.mxu0 0
        %975 = vmatprep.subr.bf16.mxu0 0
        %976 = vmatpush1.bf16.msra.mxu0 %v961
        %977 = vmatprep.subr.bf16.mxu0 0
        %978 = vmatpush1.bf16.msra.mxu0 %v886
        %979 = vmatprep.subr.bf16.mxu0 0
        %980 = vmatpush2.bf16.msra.mxu0 0
        %981 = vmatprep.subr.bf16.mxu0 0
        %982 = vmatpush2.bf16.msra.mxu0 0
        %983 = vmatprep.subr.bf16.mxu0 0
        %984 = vmatpush2.bf16.msra.mxu0 0
        %985 = vmatprep.subr.bf16.mxu0 0
        %986 = vmatpush2.bf16.msra.mxu0 0
        %987 = vmatprep.subr.bf16.mxu0 0
        %988 = vmatpush2.bf16.msra.mxu0 0
        %989 = vmatprep.subr.bf16.mxu0 0
        %990 = vmatpush2.bf16.msra.mxu0 0
        %991 = vmatprep.subr.bf16.mxu0 0
        %992 = vmatpush2.bf16.msra.mxu0 0
        %993 = vmatprep.subr.bf16.mxu0 0
        %994 = vmatpush2.bf16.msra.mxu0 0
        %995 = vmatprep.mubr.bf16.mxu0 0
        %996 = vmatmul.mubr.bf16.gmra.mxu0 %v952
        %v997 = vpop.f32.mrf.mxu0
        %v998 = vadd.f32 %v909, %v997
        %v999 = vpop.f32.mrf.mxu0
        %v1000 = vpop.f32.mrf.mxu0
        %v1001 = vadd.f32 %v914, %v1000
        %v1002 = vpop.f32.mrf.mxu0
        %1003 = vmatprep.mubr.bf16.mxu0 0
        %1004 = vmatmul.mubr.bf16.gmra.mxu0 %v955
        %v1005 = vpop.f32.mrf.mxu0
        %v1006 = vadd.f32 %v919, %v1005
        %v1007 = vpop.f32.mrf.mxu0
        %v1008 = vpop.f32.mrf.mxu0
        %v1009 = vadd.f32 %v924, %v1008
        %v1010 = vpop.f32.mrf.mxu0
        %1011 = vmatprep.mubr.bf16.mxu0 0
        %1012 = vmatmul.mubr.bf16.gmra.mxu0 %v958
        %v1013 = vpop.f32.mrf.mxu0
        %v1014 = vadd.f32 %v929, %v1013
        %v1015 = vpop.f32.mrf.mxu0
        %v1016 = vpop.f32.mrf.mxu0
        %v1017 = vadd.f32 %v934, %v1016
        %v1018 = vpop.f32.mrf.mxu0
        %1019 = vdwg.mxu0
        %1020 = vst [vmem:[%s271] sm:$0xff] %v998
        %1021 = vst [vmem:[%s271 + $0x8] sm:$0xff] %v1001
        %1022 = vst [vmem:[%s271 + $0x10] sm:$0xff] %v1006
        %1023 = vst [vmem:[%s271 + $0x18] sm:$0xff] %v1009
        %1024 = vst [vmem:[%s271 + $0x20] sm:$0xff] %v1014
        %1025 = vst [vmem:[%s271 + $0x28] sm:$0xff] %v1017
        %s1026 = sand.u32 %s103, 1
        %s1027 = scalar_lea.sflag [#allocation4], %s1026
        %s1028 = sand.u32 %s103, 1
        %s1029 = smul.addr %s1028, 48
        %s1030 = scalar_lea.vmem [#allocation3], %s1029
        %s1031 = sand.u32 %s129, 1
        %s1032 = scalar_lea.sflag [#allocation6], %s1031
        %s1033 = sand.u32 %s129, 1
        %s1034 = scalar_lea.vmem [#allocation5], %s1033
        // Predicated region
        $region71: #{tpu_custom_call.1} parent=65 // pred_check
          %p1035 = pneg %p113
        $region72: #{tpu_custom_call.1} parent=65 // pred_check_branch
          %1037 = sbr.rel (%p1035) target = $region74
        $region73: #{tpu_custom_call.1} parent=65 // pred_region
          %s1039 = ssub.s32 768, 768
          %1040 = vsyncadd %s1027, %s1039
          %s1041 = smul.addr %s22, 128
          %s1042 = scalar_lea.hbm %s3, %s1041
          %s1043 = sshll.u32 %s1030, 4
          %s1044 = int_to_ptr.vmem [resolvable:$true] %s1043
          %1049 = dma.vmem_to_hbm [thread:$0]  %s1044, 768, %s1042, %s1027, 128, 256, 8
        $region74: #{tpu_custom_call.1} parent=65 // pred_fallthru
          _
        // Predicated region
        $region75: #{tpu_custom_call.1} parent=65 // pred_check
          %p1050 = pneg %p139
        $region76: #{tpu_custom_call.1} parent=65 // pred_check_branch
          %1052 = sbr.rel (%p1050) target = $region78
        $region77: #{tpu_custom_call.1} parent=65 // pred_region
          %s1054 = ssub.s32 16, 16
          %1055 = vsyncadd %s1032, %s1054
          %s1056 = smul.addr %s22, 16
          %s1057 = scalar_lea.hbm %s4, %s1056
          %s1059 = sshll.u32 %s1034, 4
          %s1060 = int_to_ptr.vmem [resolvable:$true] %s1059
          %1062 = dma.vmem_to_hbm [thread:$0]  %s1060, 16, %s1057, %s1032
        $region78: #{tpu_custom_call.1} parent=65 // pred_fallthru
          _
      $region66: #{tpu_custom_call.1} parent=5 // pred_fallthru
        _
      %p1063 = scmp.le.s32.totalorder 2, %s17
      // Predicated region
      $region79: #{tpu_custom_call.1} parent=5 // pred_check
        %p1064 = pneg %p1063
      $region80: #{tpu_custom_call.1} parent=5 // pred_check_branch
        %1066 = sbr.rel (%p1064) target = $region82
      $region81: #{tpu_custom_call.1} parent=5 // pred_region
        %s1067 = ssub.s32 %s17, 2
        // Predicated region
        $region83: #{tpu_custom_call.1} parent=81 // pred_check
          %p1068 = pneg %p119
        $region84: #{tpu_custom_call.1} parent=81 // pred_check_branch
          %1070 = sbr.rel (%p1068) target = $region86
        $region85: #{tpu_custom_call.1} parent=81 // pred_region
          %s1071 = sand.u32 %s104, 1
          %s1072 = scalar_lea.sflag [#allocation4], %s1071
          %s1073 = sand.u32 %s104, 1
          %s1074 = smul.addr %s1073, 48
          %s1075 = scalar_lea.vmem [#allocation3], %s1074
          %1076 = dma.done %s1072, 768
        $region86: #{tpu_custom_call.1} parent=81 // pred_fallthru
          _
        // Predicated region
        $region87: #{tpu_custom_call.1} parent=81 // pred_check
          %p1077 = pneg %p145
        $region88: #{tpu_custom_call.1} parent=81 // pred_check_branch
          %1079 = sbr.rel (%p1077) target = $region90
        $region89: #{tpu_custom_call.1} parent=81 // pred_region
          %s1080 = sand.u32 %s130, 1
          %s1081 = scalar_lea.sflag [#allocation6], %s1080
          %s1082 = sand.u32 %s130, 1
          %s1083 = scalar_lea.vmem [#allocation5], %s1082
          %1084 = dma.done %s1081, 16
        $region90: #{tpu_custom_call.1} parent=81 // pred_fallthru
          _
      $region82: #{tpu_custom_call.1} parent=5 // pred_fallthru
        _
    $region6: #{tpu_custom_call.1} parent=1 // loop_footer
      %s21 = sadd.s32 1, %s17
    $region7: #{tpu_custom_call.1} parent=1 // loop_footer_branch
      %16 = sbr.rel target = $region3
    $region8: #{tpu_custom_call.1} parent=1 // loop_exit
      _
    %1085 = vsyncpa [#allocation4], 1
    %s1086 = scalar_lea.sflag [#allocation4], 1
    %1087 = vsyncpa %s1086, 1
    %1088 = vsyncpa [#allocation6], 1
    %s1089 = scalar_lea.sflag [#allocation6], 1
    %1090 = vsyncpa %s1089, 1

</llo_original>
